<compile_context>
chip_gen: v5e
topology: v5e:2x2
jax: 0.10.0
libtpu: 0.0.40
codegen_flags: <defaults>
</compile_context>

<pallas_src>
import jax
import jax.numpy as jnp
from jax.experimental import pallas as pl
from jax.experimental.pallas import tpu as pltpu

M, K, N = 100, 200, 200  # batch rows, in_features, out_features (nn.Linear(200, 200))


def _linear_add_relu_kernel(x_ref, wt_ref, b_ref, other_ref, o_ref):
    # x: (M, K) f32  -> cast to bf16 in-kernel (halves the matmul operand width,
    #                   native MXU path) ; wt: (K, N) bf16 pre-transposed weight.
    x_bf = x_ref[...].astype(jnp.bfloat16)
    y = jnp.dot(x_bf, wt_ref[...], preferred_element_type=jnp.float32)  # (M, N) f32
    y = y + b_ref[...] + other_ref[...]            # f32 VPU epilogue
    o_ref[...] = jnp.maximum(y, 0.0)


def prep_params(weight, bias):
    """One-time (init-time) parameter prep, outside the per-call hot path:
    pre-transpose the PyTorch (out, in) weight to (in, out) and narrow the
    matmul operand to bf16; reshape bias for broadcasting."""
    w_t = weight.T.astype(jnp.bfloat16)               # (K, N) bf16
    b = bias.reshape(1, N).astype(jnp.float32)        # (1, N) f32
    return w_t, b


@jax.jit
def linear_add_relu(x, w_t, b, other):
    """y = relu(x @ weight.T + bias + other)  (PyTorch nn.Linear semantics)."""
    vmem = pl.BlockSpec(memory_space=pltpu.MemorySpace.VMEM)
    bytes_accessed = (M * K * 4        # x (f32)
                      + K * N * 2      # weight (bf16, pre-transposed)
                      + N * 4          # bias (f32)
                      + M * N * 4      # other (f32)
                      + M * N * 4)     # output (f32)
    return pl.pallas_call(
        _linear_add_relu_kernel,
        out_shape=jax.ShapeDtypeStruct((M, N), jnp.float32),
        in_specs=[vmem, vmem, vmem, vmem],
        out_specs=vmem,
        cost_estimate=pl.CostEstimate(
            flops=2 * M * K * N,
            transcendentals=0,
            bytes_accessed=bytes_accessed),
    )(x, w_t, b, other)


if __name__ == "__main__":
    key = jax.random.PRNGKey(0)
    kx, kw, kb, ko = jax.random.split(key, 4)

    # Deterministic synthetic parameters (nn.Linear(200, 200)).
    x1 = jax.random.normal(kx, (M, K), dtype=jnp.float32)
    weight = jax.random.normal(kw, (N, K), dtype=jnp.float32) * (1.0 / jnp.sqrt(K))
    bias = jax.random.normal(kb, (N,), dtype=jnp.float32) * 0.01
    other = jax.random.uniform(ko, (M, N), dtype=jnp.float32)

    # One-time parameter prep (transpose + bf16 cast), outside the hot path.
    w_prepped, b_prepped = prep_params(weight, bias)

    out = jax.block_until_ready(linear_add_relu(x1, w_prepped, b_prepped, other))

    # Reference with the same bf16-rounded matmul operands (f32 accumulate),
    # so the tolerance can stay tight despite the bf16 MXU path.
    x_bf = x1.astype(jnp.bfloat16).astype(jnp.float32)
    w_bf = weight.astype(jnp.bfloat16).astype(jnp.float32)
    ref = jnp.maximum(x_bf @ w_bf.T + bias + other, 0.0)

    assert out.shape == (M, N)
    assert jnp.allclose(out, ref, atol=1e-2, rtol=1e-2)

    print("KERNEL_OK")
</pallas_src>

<mosaic_0001>
module attributes {stable_mosaic.version = 11 : i64} {
  func.func @_linear_add_relu_kernel(%arg0: memref<100x200xf32, #tpu.memory_space<vmem>>, %arg1: memref<200x200xbf16, #tpu.memory_space<vmem>>, %arg2: memref<1x200xf32, #tpu.memory_space<vmem>>, %arg3: memref<100x200xf32, #tpu.memory_space<vmem>>, %arg4: memref<100x200xf32, #tpu.memory_space<vmem>>) attributes {dimension_semantics = [], scalar_prefetch = 0 : i64, scratch_operands = 0 : i64, tpu.core_type = #tpu.core_type<tc>} {
    %c0 = arith.constant 0 : index
    %c0_0 = arith.constant 0 : index
    %0 = vector.load %arg0[%c0, %c0_0] : memref<100x200xf32, #tpu.memory_space<vmem>>, vector<100x200xf32>
    %1 = arith.truncf %0 : vector<100x200xf32> to vector<100x200xbf16>
    %c0_1 = arith.constant 0 : index
    %c0_2 = arith.constant 0 : index
    %2 = vector.load %arg1[%c0_1, %c0_2] : memref<200x200xbf16, #tpu.memory_space<vmem>>, vector<200x200xbf16>
    %cst = arith.constant dense<0.000000e+00> : vector<100x200xf32>
    %3 = tpu.matmul %1, %2, %cst {dimension_numbers = #tpu.dot_dimension_numbers<[1], [0], [0], [1], [0, 0, 1, 1], [], []>} : vector<100x200xbf16>, vector<200x200xbf16>, vector<100x200xf32> -> vector<100x200xf32>
    %c0_3 = arith.constant 0 : index
    %c0_4 = arith.constant 0 : index
    %4 = vector.load %arg2[%c0_3, %c0_4] : memref<1x200xf32, #tpu.memory_space<vmem>>, vector<1x200xf32>
    %5 = vector.broadcast %4 : vector<1x200xf32> to vector<100x200xf32>
    %6 = arith.addf %3, %5 : vector<100x200xf32>
    %c0_5 = arith.constant 0 : index
    %c0_6 = arith.constant 0 : index
    %7 = vector.load %arg3[%c0_5, %c0_6] : memref<100x200xf32, #tpu.memory_space<vmem>>, vector<100x200xf32>
    %8 = arith.addf %6, %7 : vector<100x200xf32>
    %cst_7 = arith.constant 0.000000e+00 : f32
    %9 = vector.broadcast %cst_7 : f32 to vector<100x200xf32>
    %10 = arith.maximumf %8, %9 : vector<100x200xf32>
    %c0_8 = arith.constant 0 : index
    %c0_9 = arith.constant 0 : index
    %11 = vector.load %arg4[%c0_8, %c0_9] : memref<100x200xf32, #tpu.memory_space<vmem>>, vector<100x200xf32>
    tpu.vector_store %arg4[%c0_8, %c0_9], %10 {strides = array<i32>} : memref<100x200xf32, #tpu.memory_space<vmem>>, vector<100x200xf32>,
    return
  }
}

</mosaic_0001>

<llo_original>
// kernel: linear_add_relu.1
$region0: #{linear_add_relu.1}
  #allocation0 [shape = 'u32[]', space=smem, size = 0x4, offset = 0x4, fixed_abs, tag = 'smem constant byte address 0x4 - core index']
  #allocation1 [shape = 'u32[72,128]{1,0:T(1,128)}', space=vmem, size = 0x9000, scoped, tag = 'internal scratch']
  %s0 = inlined_call_operand.vmem [shape: f32[100,200], index: 0, kind: input, shape index: {}]
  %s1 = inlined_call_operand.vmem [shape: bf16[200,200], index: 1, kind: input, shape index: {}]
  %s2 = inlined_call_operand.vmem [shape: f32[1,200], index: 2, kind: input, shape index: {}]
  %s3 = inlined_call_operand.vmem [shape: f32[100,200], index: 3, kind: input, shape index: {}]
  %s4 = inlined_call_operand.vmem [shape: f32[100,200], index: 4, kind: output, shape index: {}]
  %s5 = sld [smem:[#allocation0]]
  $region26: #{linear_add_relu.1} parent=0
    _
  %s7 = ssub.s32 1, %s5
  %s8 = scalar_select 0, %s7, %s5
  // Predicated region
  $region2: #{linear_add_relu.1} parent=0 // pred_check
    _
  $region3: #{linear_add_relu.1} parent=0 // pred_check_branch
    %10 = sbr.rel (0) target = $region5
  $region4: #{linear_add_relu.1} parent=0 // pred_region
    _
  $region5: #{linear_add_relu.1} parent=0 // pred_fallthru
    _
  // Predicated region
  $region6: #{linear_add_relu.1} parent=0 // pred_check
    _
  $region7: #{linear_add_relu.1} parent=0 // pred_check_branch
    %12 = sbr.rel (0) target = $region9
  $region8: #{linear_add_relu.1} parent=0 // pred_region
    _
  $region9: #{linear_add_relu.1} parent=0 // pred_fallthru
    _
  // Predicated region
  $region10: #{linear_add_relu.1} parent=0 // pred_check
    _
  $region11: #{linear_add_relu.1} parent=0 // pred_check_branch
    %14 = sbr.rel (0) target = $region13
  $region12: #{linear_add_relu.1} parent=0 // pred_region
    _
  $region13: #{linear_add_relu.1} parent=0 // pred_fallthru
    _
  // Predicated region
  $region14: #{linear_add_relu.1} parent=0 // pred_check
    _
  $region15: #{linear_add_relu.1} parent=0 // pred_check_branch
    %16 = sbr.rel (0) target = $region17
  $region16: #{linear_add_relu.1} parent=0 // pred_region
    _
  $region17: #{linear_add_relu.1} parent=0 // pred_fallthru
    _
  %v18 = vld [vmem:[%s0] sm:$0xff]
  %v19 = vld [vmem:[%s0 + $0x8] sm:$0xff]
  %v20 = vld [vmem:[%s0 + $0x10] sm:$0xff]
  %v21 = vld [vmem:[%s0 + $0x18] sm:$0xff]
  %v22 = vld [vmem:[%s0 + $0x20] sm:$0xff]
  %v23 = vld [vmem:[%s0 + $0x28] sm:$0xff]
  %v24 = vld [vmem:[%s0 + $0x30] sm:$0xff]
  %v25 = vld [vmem:[%s0 + $0x38] sm:$0xff]
  %v26 = vld [vmem:[%s0 + $0x40] sm:$0xff]
  %v27 = vld [vmem:[%s0 + $0x48] sm:$0xff]
  %v28 = vld [vmem:[%s0 + $0x50] sm:$0xff]
  %v29 = vld [vmem:[%s0 + $0x58] sm:$0xff]
  %v30 = vld [vmem:[%s0 + $0x60] sm:$0xff]
  %v31 = vld [vmem:[%s0 + $0x68] sm:$0xff]
  %v32 = vld [vmem:[%s0 + $0x70] sm:$0xff]
  %v33 = vld [vmem:[%s0 + $0x78] sm:$0xff]
  %v34 = vld [vmem:[%s0 + $0x80] sm:$0xff]
  %v35 = vld [vmem:[%s0 + $0x88] sm:$0xff]
  %v36 = vld [vmem:[%s0 + $0x90] sm:$0xff]
  %v37 = vld [vmem:[%s0 + $0x98] sm:$0xff]
  %v38 = vld [vmem:[%s0 + $0xa0] sm:$0xff]
  %v39 = vld [vmem:[%s0 + $0xa8] sm:$0xff]
  %v40 = vld [vmem:[%s0 + $0xb0] sm:$0xff]
  %v41 = vld [vmem:[%s0 + $0xb8] sm:$0xff]
  %v42 = vld [vmem:[%s0 + $0xc0] sm:$0xf]
  %v43 = vld [vmem:[%s0 + $0xc8] sm:$0xf]
  %v44 = vpack.c.bf16 %v20, %v18
  %v45 = vpack.c.bf16 %v21, %v19
  %v46 = vpack.c.bf16 %v24, %v22
  %v47 = vpack.c.bf16 %v25, %v23
  %v48 = vpack.c.bf16 %v28, %v26
  %v49 = vpack.c.bf16 %v29, %v27
  %v50 = vpack.c.bf16 %v32, %v30
  %v51 = vpack.c.bf16 %v33, %v31
  %v52 = vpack.c.bf16 %v36, %v34
  %v53 = vpack.c.bf16 %v37, %v35
  %v54 = vpack.c.bf16 %v40, %v38
  %v55 = vpack.c.bf16 %v41, %v39
  %v56 = vpack.c.bf16 %v42, %v42
  %v57 = vpack.c.bf16 %v43, %v43
  %v58 = vld [vmem:[%s1] sm:$0xff]
  %v59 = vld [vmem:[%s1 + $0x8] sm:$0xff]
  %v60 = vld [vmem:[%s1 + $0x10] sm:$0xff]
  %v61 = vld [vmem:[%s1 + $0x18] sm:$0xff]
  %v62 = vld [vmem:[%s1 + $0x20] sm:$0xff]
  %v63 = vld [vmem:[%s1 + $0x28] sm:$0xff]
  %v64 = vld [vmem:[%s1 + $0x30] sm:$0xff]
  %v65 = vld [vmem:[%s1 + $0x38] sm:$0xff]
  %v66 = vld [vmem:[%s1 + $0x40] sm:$0xff]
  %v67 = vld [vmem:[%s1 + $0x48] sm:$0xff]
  %v68 = vld [vmem:[%s1 + $0x50] sm:$0xff]
  %v69 = vld [vmem:[%s1 + $0x58] sm:$0xff]
  %v70 = vld [vmem:[%s1 + $0x60] sm:$0xff]
  %v71 = vld [vmem:[%s1 + $0x68] sm:$0xff]
  %v72 = vld [vmem:[%s1 + $0x70] sm:$0xff]
  %v73 = vld [vmem:[%s1 + $0x78] sm:$0xff]
  %v74 = vld [vmem:[%s1 + $0x80] sm:$0xff]
  %v75 = vld [vmem:[%s1 + $0x88] sm:$0xff]
  %v76 = vld [vmem:[%s1 + $0x90] sm:$0xff]
  %v77 = vld [vmem:[%s1 + $0x98] sm:$0xff]
  %v78 = vld [vmem:[%s1 + $0xa0] sm:$0xff]
  %v79 = vld [vmem:[%s1 + $0xa8] sm:$0xff]
  %v80 = vld [vmem:[%s1 + $0xb0] sm:$0xff]
  %v81 = vld [vmem:[%s1 + $0xb8] sm:$0xff]
  %v82 = vld [vmem:[%s1 + $0xc0] sm:$0xff]
  %v83 = vld [vmem:[%s2] sm:$0x3]
  %v85 = vperm.slane %v83, 0
  %v86 = vperm.slane %v83, 1
  %v114 = vunpack.c.l.b16 %v58
  %v115 = vunpack.c.h.b16 %v58
  %v116 = vunpack.c.l.b16 %v59
  %v117 = vunpack.c.h.b16 %v59
  %v118 = vunpack.c.l.b16 %v60
  %v119 = vunpack.c.h.b16 %v60
  %v120 = vunpack.c.l.b16 %v61
  %v121 = vunpack.c.h.b16 %v61
  %v122 = vunpack.c.l.b16 %v62
  %v123 = vunpack.c.h.b16 %v62
  %v124 = vunpack.c.l.b16 %v63
  %v125 = vunpack.c.h.b16 %v63
  %v126 = vunpack.c.l.b16 %v64
  %v127 = vunpack.c.h.b16 %v64
  %v128 = vunpack.c.l.b16 %v65
  %v129 = vunpack.c.h.b16 %v65
  %v130 = vunpack.c.l.b16 %v66
  %v131 = vunpack.c.h.b16 %v66
  %v132 = vunpack.c.l.b16 %v67
  %v133 = vunpack.c.h.b16 %v67
  %v134 = vunpack.c.l.b16 %v68
  %v135 = vunpack.c.h.b16 %v68
  %v136 = vunpack.c.l.b16 %v69
  %v137 = vunpack.c.h.b16 %v69
  %v138 = vunpack.c.l.b16 %v70
  %v139 = vunpack.c.h.b16 %v70
  %v140 = vunpack.c.l.b16 %v71
  %v141 = vunpack.c.h.b16 %v71
  %v142 = vunpack.c.l.b16 %v72
  %v143 = vunpack.c.h.b16 %v72
  %v144 = vunpack.c.l.b16 %v73
  %v145 = vunpack.c.h.b16 %v73
  %v146 = vunpack.c.l.b16 %v74
  %v147 = vunpack.c.h.b16 %v74
  %v148 = vunpack.c.l.b16 %v75
  %v149 = vunpack.c.h.b16 %v75
  %v150 = vunpack.c.l.b16 %v76
  %v151 = vunpack.c.h.b16 %v76
  %v152 = vunpack.c.l.b16 %v77
  %v153 = vunpack.c.h.b16 %v77
  %v154 = vunpack.c.l.b16 %v78
  %v155 = vunpack.c.h.b16 %v78
  %v156 = vunpack.c.l.b16 %v79
  %v157 = vunpack.c.h.b16 %v79
  %v158 = vunpack.c.l.b16 %v80
  %v159 = vunpack.c.h.b16 %v80
  %v160 = vunpack.c.l.b16 %v81
  %v161 = vunpack.c.h.b16 %v81
  %v162 = vunpack.c.l.b16 %v82
  %v163 = vunpack.c.h.b16 %v82
  %v164 = vpack.c.b16 %v116, %v114
  %v165 = vpack.c.b16 %v117, %v115
  %v166 = vpack.c.b16 %v120, %v118
  %v167 = vpack.c.b16 %v121, %v119
  %v168 = vpack.c.b16 %v124, %v122
  %v169 = vpack.c.b16 %v125, %v123
  %v170 = vpack.c.b16 %v128, %v126
  %v171 = vpack.c.b16 %v129, %v127
  %v172 = vpack.c.b16 %v132, %v130
  %v173 = vpack.c.b16 %v133, %v131
  %v174 = vpack.c.b16 %v136, %v134
  %v175 = vpack.c.b16 %v137, %v135
  %v176 = vpack.c.b16 %v140, %v138
  %v177 = vpack.c.b16 %v141, %v139
  %v178 = vpack.c.b16 %v144, %v142
  %v179 = vpack.c.b16 %v145, %v143
  %v180 = vpack.c.b16 %v148, %v146
  %v181 = vpack.c.b16 %v149, %v147
  %v182 = vpack.c.b16 %v152, %v150
  %v183 = vpack.c.b16 %v153, %v151
  %v184 = vpack.c.b16 %v156, %v154
  %v185 = vpack.c.b16 %v157, %v155
  %v186 = vpack.c.b16 %v160, %v158
  %v187 = vpack.c.b16 %v161, %v159
  %v188 = vpack.c.b16 %v162, %v162
  %v189 = vpack.c.b16 %v163, %v163
  %vm214 = vcmask 588800
  %v216 = vsel %vm214, %v45, 0
  %v219 = vsel %vm214, %v47, 0
  %v222 = vsel %vm214, %v49, 0
  %v225 = vsel %vm214, %v51, 0
  %v228 = vsel %vm214, %v53, 0
  %v231 = vsel %vm214, %v55, 0
  %v234 = vsel %vm214, %v57, 0
  %vm236 = vcmask 1043456
  %v238 = vsel %vm236, %v188, 0
  %v241 = vsel %vm236, %v189, 0
  %243 = vmatpush.bf16.msra.mxu0 %v178
  %244 = vmatpush.bf16.msra.mxu0 %v176
  %245 = vmatpush.bf16.msra.mxu0 %v174
  %246 = vmatpush.bf16.msra.mxu0 %v172
  %247 = vmatpush.bf16.msra.mxu0 %v170
  %248 = vmatpush.bf16.msra.mxu0 %v168
  %249 = vmatpush.bf16.msra.mxu0 %v166
  %250 = vmatpush.bf16.msra.mxu0 %v164
  %251 = vmatmul.bf16.gmra.mxu0 %v44
  %v252 = vpop.f32.mrf.mxu0
  %v253 = vadd.f32 %v85, %v252
  %v254 = vpop.f32.mrf.mxu0
  %v255 = vadd.f32 %v85, %v254
  %256 = vmatmul.bf16.gmra.mxu0 %v46
  %v257 = vpop.f32.mrf.mxu0
  %v258 = vadd.f32 %v85, %v257
  %v259 = vpop.f32.mrf.mxu0
  %v260 = vadd.f32 %v85, %v259
  %261 = vmatmul.bf16.gmra.mxu0 %v48
  %v262 = vpop.f32.mrf.mxu0
  %v263 = vadd.f32 %v85, %v262
  %v264 = vpop.f32.mrf.mxu0
  %v265 = vadd.f32 %v85, %v264
  %266 = vmatmul.bf16.gmra.mxu0 %v50
  %v267 = vpop.f32.mrf.mxu0
  %v268 = vadd.f32 %v85, %v267
  %v269 = vpop.f32.mrf.mxu0
  %v270 = vadd.f32 %v85, %v269
  %271 = vmatmul.bf16.gmra.mxu0 %v52
  %v272 = vpop.f32.mrf.mxu0
  %v273 = vadd.f32 %v85, %v272
  %v274 = vpop.f32.mrf.mxu0
  %v275 = vadd.f32 %v85, %v274
  %276 = vmatmul.bf16.gmra.mxu0 %v54
  %v277 = vpop.f32.mrf.mxu0
  %v278 = vadd.f32 %v85, %v277
  %v279 = vpop.f32.mrf.mxu0
  %v280 = vadd.f32 %v85, %v279
  %281 = vmatmul.bf16.gmra.mxu0 %v56
  %v282 = vpop.f32.mrf.mxu0
  %v283 = vadd.f32 %v85, %v282
  %v284 = vpop.f32.mrf.mxu0
  %285 = vdwg.mxu0
  %286 = vmatpush.bf16.msra.mxu0 0
  %287 = vmatpush.bf16.msra.mxu0 0
  %288 = vmatpush.bf16.msra.mxu0 0
  %289 = vmatpush.bf16.msra.mxu0 %v238
  %290 = vmatpush.bf16.msra.mxu0 %v186
  %291 = vmatpush.bf16.msra.mxu0 %v184
  %292 = vmatpush.bf16.msra.mxu0 %v182
  %293 = vmatpush.bf16.msra.mxu0 %v180
  %294 = vmatmul.bf16.gmra.mxu0 %v216
  %v295 = vpop.f32.mrf.mxu0
  %v296 = vadd.f32 %v253, %v295
  %v297 = vpop.f32.mrf.mxu0
  %v298 = vadd.f32 %v255, %v297
  %299 = vmatmul.bf16.gmra.mxu0 %v219
  %v300 = vpop.f32.mrf.mxu0
  %v301 = vadd.f32 %v258, %v300
  %v302 = vpop.f32.mrf.mxu0
  %v303 = vadd.f32 %v260, %v302
  %304 = vmatmul.bf16.gmra.mxu0 %v222
  %v305 = vpop.f32.mrf.mxu0
  %v306 = vadd.f32 %v263, %v305
  %v307 = vpop.f32.mrf.mxu0
  %v308 = vadd.f32 %v265, %v307
  %309 = vmatmul.bf16.gmra.mxu0 %v225
  %v310 = vpop.f32.mrf.mxu0
  %v311 = vadd.f32 %v268, %v310
  %v312 = vpop.f32.mrf.mxu0
  %v313 = vadd.f32 %v270, %v312
  %314 = vmatmul.bf16.gmra.mxu0 %v228
  %v315 = vpop.f32.mrf.mxu0
  %v316 = vadd.f32 %v273, %v315
  %v317 = vpop.f32.mrf.mxu0
  %v318 = vadd.f32 %v275, %v317
  %319 = vmatmul.bf16.gmra.mxu0 %v231
  %v320 = vpop.f32.mrf.mxu0
  %v321 = vadd.f32 %v278, %v320
  %v322 = vpop.f32.mrf.mxu0
  %v323 = vadd.f32 %v280, %v322
  %324 = vmatmul.bf16.gmra.mxu0 %v234
  %v325 = vpop.f32.mrf.mxu0
  %v326 = vadd.f32 %v283, %v325
  %v327 = vpop.f32.mrf.mxu0
  %328 = vdwg.mxu0
  %329 = vmatpush.bf16.msra.mxu0 %v179
  %330 = vmatpush.bf16.msra.mxu0 %v177
  %331 = vmatpush.bf16.msra.mxu0 %v175
  %332 = vmatpush.bf16.msra.mxu0 %v173
  %333 = vmatpush.bf16.msra.mxu0 %v171
  %334 = vmatpush.bf16.msra.mxu0 %v169
  %335 = vmatpush.bf16.msra.mxu0 %v167
  %336 = vmatpush.bf16.msra.mxu0 %v165
  %337 = vmatmul.bf16.gmra.mxu0 %v44
  %v338 = vpop.f32.mrf.mxu0
  %v339 = vadd.f32 %v86, %v338
  %v340 = vpop.f32.mrf.mxu0
  %v341 = vadd.f32 %v86, %v340
  %342 = vmatmul.bf16.gmra.mxu0 %v46
  %v343 = vpop.f32.mrf.mxu0
  %v344 = vadd.f32 %v86, %v343
  %v345 = vpop.f32.mrf.mxu0
  %v346 = vadd.f32 %v86, %v345
  %347 = vmatmul.bf16.gmra.mxu0 %v48
  %v348 = vpop.f32.mrf.mxu0
  %v349 = vadd.f32 %v86, %v348
  %v350 = vpop.f32.mrf.mxu0
  %v351 = vadd.f32 %v86, %v350
  %352 = vmatmul.bf16.gmra.mxu0 %v50
  %v353 = vpop.f32.mrf.mxu0
  %v354 = vadd.f32 %v86, %v353
  %v355 = vpop.f32.mrf.mxu0
  %v356 = vadd.f32 %v86, %v355
  %357 = vmatmul.bf16.gmra.mxu0 %v52
  %v358 = vpop.f32.mrf.mxu0
  %v359 = vadd.f32 %v86, %v358
  %v360 = vpop.f32.mrf.mxu0
  %v361 = vadd.f32 %v86, %v360
  %362 = vmatmul.bf16.gmra.mxu0 %v54
  %v363 = vpop.f32.mrf.mxu0
  %v364 = vadd.f32 %v86, %v363
  %v365 = vpop.f32.mrf.mxu0
  %v366 = vadd.f32 %v86, %v365
  %367 = vmatmul.bf16.gmra.mxu0 %v56
  %v368 = vpop.f32.mrf.mxu0
  %v369 = vadd.f32 %v86, %v368
  %v370 = vpop.f32.mrf.mxu0
  %371 = vdwg.mxu0
  %372 = vmatpush.bf16.msra.mxu0 0
  %373 = vmatpush.bf16.msra.mxu0 0
  %374 = vmatpush.bf16.msra.mxu0 0
  %375 = vmatpush.bf16.msra.mxu0 %v241
  %376 = vmatpush.bf16.msra.mxu0 %v187
  %377 = vmatpush.bf16.msra.mxu0 %v185
  %378 = vmatpush.bf16.msra.mxu0 %v183
  %379 = vmatpush.bf16.msra.mxu0 %v181
  %380 = vmatmul.bf16.gmra.mxu0 %v216
  %v381 = vpop.f32.mrf.mxu0
  %v382 = vadd.f32 %v339, %v381
  %v383 = vpop.f32.mrf.mxu0
  %v384 = vadd.f32 %v341, %v383
  %385 = vmatmul.bf16.gmra.mxu0 %v219
  %v386 = vpop.f32.mrf.mxu0
  %v387 = vadd.f32 %v344, %v386
  %v388 = vpop.f32.mrf.mxu0
  %v389 = vadd.f32 %v346, %v388
  %390 = vmatmul.bf16.gmra.mxu0 %v222
  %v391 = vpop.f32.mrf.mxu0
  %v392 = vadd.f32 %v349, %v391
  %v393 = vpop.f32.mrf.mxu0
  %v394 = vadd.f32 %v351, %v393
  %395 = vmatmul.bf16.gmra.mxu0 %v225
  %v396 = vpop.f32.mrf.mxu0
  %v397 = vadd.f32 %v354, %v396
  %v398 = vpop.f32.mrf.mxu0
  %v399 = vadd.f32 %v356, %v398
  %400 = vmatmul.bf16.gmra.mxu0 %v228
  %v401 = vpop.f32.mrf.mxu0
  %v402 = vadd.f32 %v359, %v401
  %v403 = vpop.f32.mrf.mxu0
  %v404 = vadd.f32 %v361, %v403
  %405 = vmatmul.bf16.gmra.mxu0 %v231
  %v406 = vpop.f32.mrf.mxu0
  %v407 = vadd.f32 %v364, %v406
  %v408 = vpop.f32.mrf.mxu0
  %v409 = vadd.f32 %v366, %v408
  %410 = vmatmul.bf16.gmra.mxu0 %v234
  %v411 = vpop.f32.mrf.mxu0
  %v412 = vadd.f32 %v369, %v411
  %v413 = vpop.f32.mrf.mxu0
  %414 = vdwg.mxu0
  %v415 = vld [vmem:[%s3] sm:$0xff]
  %v416 = vld [vmem:[%s3 + $0x8] sm:$0xff]
  %v417 = vld [vmem:[%s3 + $0x10] sm:$0xff]
  %v418 = vld [vmem:[%s3 + $0x18] sm:$0xff]
  %v419 = vld [vmem:[%s3 + $0x20] sm:$0xff]
  %v420 = vld [vmem:[%s3 + $0x28] sm:$0xff]
  %v421 = vld [vmem:[%s3 + $0x30] sm:$0xff]
  %v422 = vld [vmem:[%s3 + $0x38] sm:$0xff]
  %v423 = vld [vmem:[%s3 + $0x40] sm:$0xff]
  %v424 = vld [vmem:[%s3 + $0x48] sm:$0xff]
  %v425 = vld [vmem:[%s3 + $0x50] sm:$0xff]
  %v426 = vld [vmem:[%s3 + $0x58] sm:$0xff]
  %v427 = vld [vmem:[%s3 + $0x60] sm:$0xff]
  %v428 = vld [vmem:[%s3 + $0x68] sm:$0xff]
  %v429 = vld [vmem:[%s3 + $0x70] sm:$0xff]
  %v430 = vld [vmem:[%s3 + $0x78] sm:$0xff]
  %v431 = vld [vmem:[%s3 + $0x80] sm:$0xff]
  %v432 = vld [vmem:[%s3 + $0x88] sm:$0xff]
  %v433 = vld [vmem:[%s3 + $0x90] sm:$0xff]
  %v434 = vld [vmem:[%s3 + $0x98] sm:$0xff]
  %v435 = vld [vmem:[%s3 + $0xa0] sm:$0xff]
  %v436 = vld [vmem:[%s3 + $0xa8] sm:$0xff]
  %v437 = vld [vmem:[%s3 + $0xb0] sm:$0xff]
  %v438 = vld [vmem:[%s3 + $0xb8] sm:$0xff]
  %v439 = vld [vmem:[%s3 + $0xc0] sm:$0xf]
  %v440 = vld [vmem:[%s3 + $0xc8] sm:$0xf]
  %v441 = vadd.f32 %v296, %v415
  %v442 = vadd.f32 %v382, %v416
  %v443 = vadd.f32 %v298, %v417
  %v444 = vadd.f32 %v384, %v418
  %v445 = vadd.f32 %v301, %v419
  %v446 = vadd.f32 %v387, %v420
  %v447 = vadd.f32 %v303, %v421
  %v448 = vadd.f32 %v389, %v422
  %v449 = vadd.f32 %v306, %v423
  %v450 = vadd.f32 %v392, %v424
  %v451 = vadd.f32 %v308, %v425
  %v452 = vadd.f32 %v394, %v426
  %v453 = vadd.f32 %v311, %v427
  %v454 = vadd.f32 %v397, %v428
  %v455 = vadd.f32 %v313, %v429
  %v456 = vadd.f32 %v399, %v430
  %v457 = vadd.f32 %v316, %v431
  %v458 = vadd.f32 %v402, %v432
  %v459 = vadd.f32 %v318, %v433
  %v460 = vadd.f32 %v404, %v434
  %v461 = vadd.f32 %v321, %v435
  %v462 = vadd.f32 %v407, %v436
  %v463 = vadd.f32 %v323, %v437
  %v464 = vadd.f32 %v409, %v438
  %v465 = vadd.f32 %v326, %v439
  %v466 = vadd.f32 %v412, %v440
  %v467 = vmax.f32 %v441, 0.0
  %v468 = vmax.f32 %v442, 0.0
  %v469 = vmax.f32 %v443, 0.0
  %v470 = vmax.f32 %v444, 0.0
  %v471 = vmax.f32 %v445, 0.0
  %v472 = vmax.f32 %v446, 0.0
  %v473 = vmax.f32 %v447, 0.0
  %v474 = vmax.f32 %v448, 0.0
  %v475 = vmax.f32 %v449, 0.0
  %v476 = vmax.f32 %v450, 0.0
  %v477 = vmax.f32 %v451, 0.0
  %v478 = vmax.f32 %v452, 0.0
  %v479 = vmax.f32 %v453, 0.0
  %v480 = vmax.f32 %v454, 0.0
  %v481 = vmax.f32 %v455, 0.0
  %v482 = vmax.f32 %v456, 0.0
  %v483 = vmax.f32 %v457, 0.0
  %v484 = vmax.f32 %v458, 0.0
  %v485 = vmax.f32 %v459, 0.0
  %v486 = vmax.f32 %v460, 0.0
  %v487 = vmax.f32 %v461, 0.0
  %v488 = vmax.f32 %v462, 0.0
  %v489 = vmax.f32 %v463, 0.0
  %v490 = vmax.f32 %v464, 0.0
  %v491 = vmax.f32 %v465, 0.0
  %v492 = vmax.f32 %v466, 0.0
  %493 = vst [vmem:[%s4] sm:$0xff] %v467
  %494 = vst.msk [vmem:[%s4 + $0x8] sm:$0xff] %vm214, %v468
  %495 = vst [vmem:[%s4 + $0x10] sm:$0xff] %v469
  %496 = vst.msk [vmem:[%s4 + $0x18] sm:$0xff] %vm214, %v470
  %497 = vst [vmem:[%s4 + $0x20] sm:$0xff] %v471
  %498 = vst.msk [vmem:[%s4 + $0x28] sm:$0xff] %vm214, %v472
  %499 = vst [vmem:[%s4 + $0x30] sm:$0xff] %v473
  %500 = vst.msk [vmem:[%s4 + $0x38] sm:$0xff] %vm214, %v474
  %501 = vst [vmem:[%s4 + $0x40] sm:$0xff] %v475
  %502 = vst.msk [vmem:[%s4 + $0x48] sm:$0xff] %vm214, %v476
  %503 = vst [vmem:[%s4 + $0x50] sm:$0xff] %v477
  %504 = vst.msk [vmem:[%s4 + $0x58] sm:$0xff] %vm214, %v478
  %505 = vst [vmem:[%s4 + $0x60] sm:$0xff] %v479
  %506 = vst.msk [vmem:[%s4 + $0x68] sm:$0xff] %vm214, %v480
  %507 = vst [vmem:[%s4 + $0x70] sm:$0xff] %v481
  %508 = vst.msk [vmem:[%s4 + $0x78] sm:$0xff] %vm214, %v482
  %509 = vst [vmem:[%s4 + $0x80] sm:$0xff] %v483
  %510 = vst.msk [vmem:[%s4 + $0x88] sm:$0xff] %vm214, %v484
  %511 = vst [vmem:[%s4 + $0x90] sm:$0xff] %v485
  %512 = vst.msk [vmem:[%s4 + $0x98] sm:$0xff] %vm214, %v486
  %513 = vst [vmem:[%s4 + $0xa0] sm:$0xff] %v487
  %514 = vst.msk [vmem:[%s4 + $0xa8] sm:$0xff] %vm214, %v488
  %515 = vst [vmem:[%s4 + $0xb0] sm:$0xff] %v489
  %516 = vst.msk [vmem:[%s4 + $0xb8] sm:$0xff] %vm214, %v490
  %517 = vst [vmem:[%s4 + $0xc0] sm:$0xf] %v491
  %vm518 = vcmask 584704
  %519 = vst.msk [vmem:[%s4 + $0xc8] sm:$0xf] %vm518, %v492
  // Predicated region
  $region18: #{linear_add_relu.1} parent=0 // pred_check
    _
  $region19: #{linear_add_relu.1} parent=0 // pred_check_branch
    %521 = sbr.rel (0) target = $region21
  $region20: #{linear_add_relu.1} parent=0 // pred_region
    _
  $region21: #{linear_add_relu.1} parent=0 // pred_fallthru
    _
  // Predicated region
  $region22: #{linear_add_relu.1} parent=0 // pred_check
    _
  $region23: #{linear_add_relu.1} parent=0 // pred_check_branch
    %523 = sbr.rel (0) target = $region25
  $region24: #{linear_add_relu.1} parent=0 // pred_region
    _
  $region25: #{linear_add_relu.1} parent=0 // pred_fallthru
    _

</llo_original>
